<compile_context>
chip_gen: v7x
topology: tpu7x:2x2x1
jax: 0.10.0
libtpu: 0.0.40
codegen_flags: <defaults>
</compile_context>

<pallas_src>
import jax
import jax.numpy as jnp
from jax.experimental import pallas as pl
from jax.experimental.pallas import tpu as pltpu

EPS_L_SAFE = 1e-18

_SUBLANES = 8
_TARGET_TILE_BYTES = 2 << 20            # ~2 MiB z blocks (1-4 MiB sweet spot)
_VMEM_LIMIT_BYTES = 48 * 1024 * 1024    # explicit scoped-VMEM budget: above
                                        # v5e's 16 MiB default, below v7x's
                                        # 64 MiB physical VMEM.


# ---------------------------------------------------------------------------
# Kernels
# ---------------------------------------------------------------------------
def _planar_packed_kernel(scal_ref, z_ref, wmat_ref, uhat_ref, sel_ref,
                          fz_ref, ld_ref):
    """Lane-dense path: each VMEM row packs g logical rows (Dp = g*D lanes).

    scal_ref : SMEM (2,)      [b, w·u_hat]
    z_ref    : VMEM (tb, Dp)  packed z tile
    wmat_ref : VMEM (Dp, Dp)  block-diag outer(w, 1): z @ wmat == w·z broadcast
    uhat_ref : VMEM (1, Dp)   u_hat tiled g times
    sel_ref  : VMEM (Dp, g)   one-hot picker (lane k*D -> log-det column k)
    fz_ref   : VMEM (tb, Dp)  packed f(z) tile
    ld_ref   : VMEM (tb, g)   per-logical-row log|det|
    """
    bias = scal_ref[0]
    w_dot_uhat = scal_ref[1]

    z = z_ref[...].astype(jnp.float32)                        # (tb, Dp)
    # Per-row reduce + broadcast on the otherwise-idle MXU (VPU/XLU stay free).
    w_z_b = jnp.dot(z, wmat_ref[...],
                    preferred_element_type=jnp.float32) + bias
    h = jnp.tanh(w_z_b)                                       # single EUP pass
    fz_ref[...] = (z + uhat_ref[...] * h).astype(fz_ref.dtype)

    # One representative lane per packed segment -> (tb, g) lane-packed logdet.
    h_sel = jnp.dot(h, sel_ref[...], preferred_element_type=jnp.float32)
    h_prime = 1.0 - h_sel * h_sel
    ld_ref[...] = jnp.log(
        EPS_L_SAFE + jnp.abs(1.0 + h_prime * w_dot_uhat)).astype(ld_ref.dtype)


def _planar_rowwise_kernel(scal_ref, z_ref, params_ref, fz_ref, ld_ref):
    """General path (D > 128 or 128 % D != 0): plain per-row lane reduction."""
    bias = scal_ref[0]
    w_dot_uhat = scal_ref[1]

    z = z_ref[...].astype(jnp.float32)                        # (tb, D)
    params = params_ref[...]                                  # (2, D)
    w_row = params[0:1, :]
    u_hat_row = params[1:2, :]

    w_z_b = jnp.sum(z * w_row, axis=-1, keepdims=True) + bias  # (tb, 1)
    h = jnp.tanh(w_z_b)
    fz_ref[...] = (z + u_hat_row * h).astype(fz_ref.dtype)
    h_prime = 1.0 - h * h
    ld_ref[...] = jnp.log(
        EPS_L_SAFE + jnp.abs(1.0 + h_prime * w_dot_uhat)).astype(ld_ref.dtype)


# ---------------------------------------------------------------------------
# Tiling
# ---------------------------------------------------------------------------
def _choose_block_rows(rows_total, lane_width, itemsize=4):
    """Rows per z tile.

    * Byte-targeted (~2 MiB per z block): big enough to amortize the
      ~0.35 us/step grid overhead, small enough that the double-buffered
      z + f_z footprint (~4x tile bytes ~= 8 MiB) fits every generation's
      scoped-VMEM budget.
    * Forces >= 2 grid steps when there is enough work so the "parallel" grid
      axis gives each v7x TensorCore at least one block.
    """
    bytes_per_row = max(1, lane_width * itemsize)
    rows = (_TARGET_TILE_BYTES // bytes_per_row) // _SUBLANES * _SUBLANES
    rows = max(_SUBLANES, rows)
    if rows_total <= rows:
        if rows_total >= 2 * _SUBLANES:
            half = -(-rows_total // 2)                    # ceil(rows_total / 2)
            rows = -(-half // _SUBLANES) * _SUBLANES      # round up to sublanes
        else:
            rows = rows_total    # single block == full dim (any row count ok)
    return rows


# ---------------------------------------------------------------------------
# Wrapper
# ---------------------------------------------------------------------------
def planar_forward(z, u, w, b):
    """Planar flow forward. z: (B, D); u, w: (D,); b: (1,). -> (f_z, log_det)."""
    B, D = z.shape
    f32 = jnp.float32

    # ---- parameter-only math, hoisted out of the kernel (O(D), done once) ----
    u32 = u.astype(f32)
    w32 = w.astype(f32)
    b32 = b.astype(f32).reshape(())
    w_dot_u = jnp.dot(w32, u32)
    # Kept bit-for-bit with the PyTorch module (overflows for w·u >~ 88 exactly
    # like the reference; jax.nn.softplus would be the stable alternative).
    m_val = -1.0 + jnp.log(EPS_L_SAFE + 1.0 + jnp.exp(w_dot_u))
    u_hat = u32 + (m_val - w_dot_u) * w32 / (EPS_L_SAFE + jnp.sum(w32 * w32))
    w_dot_uhat = jnp.dot(w32, u_hat)
    scalars = jnp.stack([b32, w_dot_uhat])              # (2,) -> SMEM scalars

    compiler_params = pltpu.CompilerParams(
        dimension_semantics=("parallel",),               # v7x: shard across TCs
        vmem_limit_bytes=_VMEM_LIMIT_BYTES)

    # ---- lane-dense packed path: (B, D) -> (B/g, g*D), g*D <= 128 ----
    if D <= 128 and 128 % D == 0:
        g = 128 // D
        while g > 1 and B % g:
            g //= 2
        Bp, Dp = B // g, g * D
        z_p = z.reshape(Bp, Dp)                          # free row-major reshape

        # Block-diagonal outer(w, 1): (z_p @ wmat)[i, k*D+d'] == w · z[i*g+k, :].
        wmat = jnp.kron(jnp.eye(g, dtype=f32),
                        jnp.outer(w32, jnp.ones((D,), f32)))      # (Dp, Dp)
        uhat_tiled = jnp.tile(u_hat, g).reshape(1, Dp)
        # One-hot picker: lane k*D of each packed row -> log-det column k.
        sel = jnp.zeros((Dp, g), f32).at[jnp.arange(g) * D,
                                         jnp.arange(g)].set(1.0)

        tb = _choose_block_rows(Bp, Dp, z.dtype.itemsize)
        grid = (pl.cdiv(Bp, tb),)       # ragged last block handled by Pallas
        fz_p, ld_p = pl.pallas_call(
            _planar_packed_kernel,
            out_shape=(jax.ShapeDtypeStruct((Bp, Dp), z.dtype),
                       jax.ShapeDtypeStruct((Bp, g), f32)),
            grid=grid,
            in_specs=[
                pl.BlockSpec(memory_space=pltpu.MemorySpace.SMEM),  # [b, w·u_hat]
                pl.BlockSpec((tb, Dp), lambda i: (i, 0)),           # z tile
                pl.BlockSpec((Dp, Dp), lambda i: (0, 0)),           # wmat (resident)
                pl.BlockSpec((1, Dp), lambda i: (0, 0)),            # u_hat (resident)
                pl.BlockSpec((Dp, g), lambda i: (0, 0)),            # sel (resident)
            ],
            out_specs=(
                pl.BlockSpec((tb, Dp), lambda i: (i, 0)),           # f_z tile
                pl.BlockSpec((tb, g), lambda i: (i, 0)),            # log_det tile
            ),
            compiler_params=compiler_params,
        )(scalars, z_p, wmat, uhat_tiled, sel)
        return fz_p.reshape(B, D), ld_p.reshape(B)

    # ---- general path: D > 128 or 128 % D != 0 ----
    # TODO(synk): for very large D (8 * D * 4 B exceeding the VMEM tile budget)
    # add an inner "arbitrary" D-axis with a (tb, 1) accumulator for w·z.
    params = jnp.stack([w32, u_hat])                     # (2, D) resident block
    tb = _choose_block_rows(B, D, z.dtype.itemsize)
    grid = (pl.cdiv(B, tb),)
    fz, ld = pl.pallas_call(
        _planar_rowwise_kernel,
        out_shape=(jax.ShapeDtypeStruct((B, D), z.dtype),
                   jax.ShapeDtypeStruct((B, 1), f32)),
        grid=grid,
        in_specs=[
            pl.BlockSpec(memory_space=pltpu.MemorySpace.SMEM),      # [b, w·u_hat]
            pl.BlockSpec((tb, D), lambda i: (i, 0)),                # z tile
            pl.BlockSpec((2, D), lambda i: (0, 0)),                 # [w; u_hat]
        ],
        out_specs=(
            pl.BlockSpec((tb, D), lambda i: (i, 0)),                # f_z tile
            pl.BlockSpec((tb, 1), lambda i: (i, 0)),                # log_det tile
        ),
        compiler_params=compiler_params,
    )(scalars, z, params)
    return fz, ld.reshape(B)


# ---------------------------------------------------------------------------
# Reference + self-check
# ---------------------------------------------------------------------------
def planar_reference(z, u, w, b):
    """Pure-JAX mirror of the PyTorch Planar.forward."""
    w_dot_u = w @ u
    m_val = -1.0 + jnp.log(EPS_L_SAFE + 1.0 + jnp.exp(w_dot_u))
    u_hat = u + (m_val - w_dot_u) * w / (EPS_L_SAFE + jnp.sum(w * w))
    w_z_b = (z @ w + b)[:, None]
    f_z = z + u_hat * jnp.tanh(w_z_b)
    psi = (1.0 - jnp.tanh(w_z_b) ** 2) * w
    log_det = jnp.log(EPS_L_SAFE + jnp.abs(1.0 + psi @ u_hat))
    return f_z, log_det


def _run_case(key, B, D):
    k_z, k_u, k_w, k_b = jax.random.split(key, 4)
    z = jax.random.normal(k_z, (B, D), dtype=jnp.float32)
    u = jax.random.normal(k_u, (D,), dtype=jnp.float32)
    w = jax.random.normal(k_w, (D,), dtype=jnp.float32)
    b = jax.random.normal(k_b, (1,), dtype=jnp.float32)

    f_z, log_det = planar_forward(z, u, w, b)
    f_z = jax.block_until_ready(f_z)
    log_det = jax.block_until_ready(log_det)

    f_z_ref, log_det_ref = planar_reference(z, u, w, b)
    assert f_z.shape == (B, D) and log_det.shape == (B,)
    assert jnp.allclose(f_z, f_z_ref, atol=1e-5, rtol=1e-5), (B, D, "f_z")
    # log() amplifies tiny fp re-association differences when
    # |1 + h'·(w·u_hat)| is small -> slightly looser tolerance here.
    assert jnp.allclose(log_det, log_det_ref, atol=1e-3, rtol=1e-3), (B, D, "log_det")


if __name__ == "__main__":
    key = jax.random.PRNGKey(0)
    k1, k2, k3 = jax.random.split(key, 3)

    _run_case(k1, B=8, D=32)      # dim_num=32: lane-packed path (g=4), one block
    _run_case(k2, B=64, D=32)     # packed path, multi-block grid (2 TCs on v7x)
    _run_case(k3, B=24, D=160)    # general row-wise path + ragged last block

    print("KERNEL_OK")
</pallas_src>

<mosaic_0001>
module attributes {stable_mosaic.version = 11 : i64} {
  func.func @_planar_packed_kernel(%arg0: i32, %arg1: memref<2xf32, #tpu.memory_space<smem>>, %arg2: memref<2x128xf32, #tpu.memory_space<vmem>>, %arg3: memref<128x128xf32, #tpu.memory_space<vmem>>, %arg4: memref<1x128xf32, #tpu.memory_space<vmem>>, %arg5: memref<128x4xf32, #tpu.memory_space<vmem>>, %arg6: memref<2x128xf32, #tpu.memory_space<vmem>>, %arg7: memref<2x4xf32, #tpu.memory_space<vmem>>) attributes {dimension_semantics = [#tpu.dimension_semantics<parallel>], iteration_bounds = array<i64: 1>, scalar_prefetch = 0 : i64, scratch_operands = 0 : i64, tpu.core_type = #tpu.core_type<tc>, window_params = [{transform_indices = @transform_0, window_bounds = array<i64: 2>}, {transform_indices = @transform_1, window_bounds = array<i64: 2, 128>}, {pipeline_mode = #tpu.pipeline_mode<synchronous>, transform_indices = @transform_2, window_bounds = array<i64: 128, 128>}, {pipeline_mode = #tpu.pipeline_mode<synchronous>, transform_indices = @transform_3, window_bounds = array<i64: 1, 128>}, {pipeline_mode = #tpu.pipeline_mode<synchronous>, transform_indices = @transform_4, window_bounds = array<i64: 128, 4>}, {transform_indices = @transform_5, window_bounds = array<i64: 2, 128>}, {transform_indices = @transform_6, window_bounds = array<i64: 2, 4>}]} {
    %c0 = arith.constant 0 : index
    %0 = memref.load %arg1[%c0] : memref<2xf32, #tpu.memory_space<smem>>
    %c1 = arith.constant 1 : index
    %1 = memref.load %arg1[%c1] : memref<2xf32, #tpu.memory_space<smem>>
    %c0_0 = arith.constant 0 : index
    %c0_1 = arith.constant 0 : index
    %2 = vector.load %arg2[%c0_0, %c0_1] : memref<2x128xf32, #tpu.memory_space<vmem>>, vector<2x128xf32>
    %c0_2 = arith.constant 0 : index
    %c0_3 = arith.constant 0 : index
    %3 = vector.load %arg3[%c0_2, %c0_3] : memref<128x128xf32, #tpu.memory_space<vmem>>, vector<128x128xf32>
    %cst = arith.constant dense<0.000000e+00> : vector<2x128xf32>
    %4 = tpu.matmul %2, %3, %cst {dimension_numbers = #tpu.dot_dimension_numbers<[1], [0], [0], [1], [0, 0, 1, 1], [], []>} : vector<2x128xf32>, vector<128x128xf32>, vector<2x128xf32> -> vector<2x128xf32>
    %5 = vector.broadcast %0 : f32 to vector<2x128xf32>
    %6 = arith.addf %4, %5 : vector<2x128xf32>
    %7 = math.tanh %6 : vector<2x128xf32>
    %c0_4 = arith.constant 0 : index
    %c0_5 = arith.constant 0 : index
    %8 = vector.load %arg4[%c0_4, %c0_5] : memref<1x128xf32, #tpu.memory_space<vmem>>, vector<1x128xf32>
    %9 = vector.broadcast %8 : vector<1x128xf32> to vector<2x128xf32>
    %10 = arith.mulf %9, %7 : vector<2x128xf32>
    %11 = arith.addf %2, %10 : vector<2x128xf32>
    %c0_6 = arith.constant 0 : index
    %c0_7 = arith.constant 0 : index
    %12 = vector.load %arg6[%c0_6, %c0_7] : memref<2x128xf32, #tpu.memory_space<vmem>>, vector<2x128xf32>
    tpu.vector_store %arg6[%c0_6, %c0_7], %11 {strides = array<i32>} : memref<2x128xf32, #tpu.memory_space<vmem>>, vector<2x128xf32>,
    %c0_8 = arith.constant 0 : index
    %c0_9 = arith.constant 0 : index
    %13 = vector.load %arg5[%c0_8, %c0_9] : memref<128x4xf32, #tpu.memory_space<vmem>>, vector<128x4xf32>
    %cst_10 = arith.constant dense<0.000000e+00> : vector<2x4xf32>
    %14 = tpu.matmul %7, %13, %cst_10 {dimension_numbers = #tpu.dot_dimension_numbers<[1], [0], [0], [1], [0, 0, 1, 1], [], []>} : vector<2x128xf32>, vector<128x4xf32>, vector<2x4xf32> -> vector<2x4xf32>
    %15 = arith.mulf %14, %14 : vector<2x4xf32>
    %cst_11 = arith.constant 1.000000e+00 : f32
    %16 = vector.broadcast %cst_11 : f32 to vector<2x4xf32>
    %17 = arith.subf %16, %15 : vector<2x4xf32>
    %18 = vector.broadcast %1 : f32 to vector<2x4xf32>
    %19 = arith.mulf %17, %18 : vector<2x4xf32>
    %cst_12 = arith.constant 1.000000e+00 : f32
    %20 = vector.broadcast %cst_12 : f32 to vector<2x4xf32>
    %21 = arith.addf %20, %19 : vector<2x4xf32>
    %22 = math.absf %21 : vector<2x4xf32>
    %cst_13 = arith.constant 1.000000e-18 : f32
    %23 = vector.broadcast %cst_13 : f32 to vector<2x4xf32>
    %24 = arith.addf %23, %22 : vector<2x4xf32>
    %25 = math.log %24 : vector<2x4xf32>
    %c0_14 = arith.constant 0 : index
    %c0_15 = arith.constant 0 : index
    %26 = vector.load %arg7[%c0_14, %c0_15] : memref<2x4xf32, #tpu.memory_space<vmem>>, vector<2x4xf32>
    tpu.vector_store %arg7[%c0_14, %c0_15], %25 {strides = array<i32>} : memref<2x4xf32, #tpu.memory_space<vmem>>, vector<2x4xf32>,
    return
  }
  func.func @transform_0(%arg0: i32) -> i32 {
    %c0_i32 = arith.constant 0 : i32
    %c0_i32_0 = arith.constant 0 : i32
    return %c0_i32 : i32
  }
  func.func @transform_1(%arg0: i32) -> (i32, i32) {
    %c0_i32 = arith.constant 0 : i32
    %c0_i32_0 = arith.constant 0 : i32
    return %arg0, %c0_i32 : i32, i32
  }
  func.func @transform_2(%arg0: i32) -> (i32, i32) {
    %c0_i32 = arith.constant 0 : i32
    %c0_i32_0 = arith.constant 0 : i32
    %c0_i32_1 = arith.constant 0 : i32
    return %c0_i32, %c0_i32_0 : i32, i32
  }
  func.func @transform_3(%arg0: i32) -> (i32, i32) {
    %c0_i32 = arith.constant 0 : i32
    %c0_i32_0 = arith.constant 0 : i32
    %c0_i32_1 = arith.constant 0 : i32
    return %c0_i32, %c0_i32_0 : i32, i32
  }
  func.func @transform_4(%arg0: i32) -> (i32, i32) {
    %c0_i32 = arith.constant 0 : i32
    %c0_i32_0 = arith.constant 0 : i32
    %c0_i32_1 = arith.constant 0 : i32
    return %c0_i32, %c0_i32_0 : i32, i32
  }
  func.func @transform_5(%arg0: i32) -> (i32, i32) {
    %c0_i32 = arith.constant 0 : i32
    %c0_i32_0 = arith.constant 0 : i32
    return %arg0, %c0_i32 : i32, i32
  }
  func.func @transform_6(%arg0: i32) -> (i32, i32) {
    %c0_i32 = arith.constant 0 : i32
    %c0_i32_0 = arith.constant 0 : i32
    return %arg0, %c0_i32 : i32, i32
  }
}

</mosaic_0001>

<llo_original>
// kernel: tpu_custom_call.1
$region0: #{tpu_custom_call.1}
  #allocation0 [shape = 'u32[]', space=smem, size = 0x4, offset = 0x4, fixed_abs, tag = 'smem constant byte address 0x4 - core index']
  #allocation1 [shape = 'u32[144,128]{1,0:T(1,128)}', space=vmem, size = 0x12000, scoped, tag = 'internal scratch']
  %s0 = inlined_call_operand.vmem [shape: f32[2], index: 0, kind: input, shape index: {}]
  %s1 = inlined_call_operand.vmem [shape: f32[2,128], index: 1, kind: input, shape index: {}]
  %s2 = inlined_call_operand.vmem [shape: f32[128,128], index: 2, kind: input, shape index: {}]
  %s3 = inlined_call_operand.vmem [shape: f32[1,128], index: 3, kind: input, shape index: {}]
  %s4 = inlined_call_operand.vmem [shape: f32[128,4], index: 4, kind: input, shape index: {}]
  %s5 = inlined_call_operand.hbm [shape: f32[2,128], index: 5, kind: output, shape index: {0}]
  %s6 = inlined_call_operand.hbm [shape: f32[2,4], index: 6, kind: output, shape index: {1}]
  %7 = xla_tuple %s5, %s6
  %s8 = sld [smem:[#allocation0]]
  $region42: #{tpu_custom_call.1} parent=0
    _
  %s10 = ssub.s32 1, %s8
  %s11 = scalar_select 0, %s10, %s8
  $region1: #{tpu_custom_call.1} parent=0
    #allocation2 [shape = 'u8[512]{0}', space=smem, size = 0x200, scoped, tag = 'input window, operand 0, single buffered']
    #allocation3 [shape = 's32[1]{0}', space=sflag, size = 0x4, scoped, tag = 'scoped memory for tpu_custom_call.1']
    #allocation4 [shape = 's32[1]{0}', space=sflag, size = 0x4, scoped, tag = 'scoped memory for tpu_custom_call.1']
    #allocation5 [shape = 'u8[1024]{0}', space=vmem, size = 0x400, scoped, tag = 'output window, operand 0, single buffered']
    #allocation6 [shape = 'u8[1024]{0}', space=vmem, size = 0x400, scoped, tag = 'output window, operand 1, single buffered']
    #allocation7 [shape = 's32[1]{0}', space=sflag, size = 0x4, scoped, tag = 'scoped memory for tpu_custom_call.1']
    %12 = vsyncpa [#allocation4], 0
    %13 = vsyncpa [#allocation3], 0
    %14 = vsyncpa [#allocation7], 0
    // Predicated region
    $region2: #{tpu_custom_call.1} parent=1 // pred_check
      _
    $region3: #{tpu_custom_call.1} parent=1 // pred_check_branch
      %16 = sbr.rel (0) target = $region5
    $region4: #{tpu_custom_call.1} parent=1 // pred_region
      %s18 = ssub.s32 16, 16
      %19 = vsyncadd [#allocation4], %s18
      %s21 = sshll.u32 %s0, 4
      %s22 = int_to_ptr.vmem [resolvable:$true] %s21
      %24 = dma.vmem_to_smem %s22, 16, [#allocation2], [#allocation4]
    $region5: #{tpu_custom_call.1} parent=1 // pred_fallthru
      _
    // Predicated region
    $region6: #{tpu_custom_call.1} parent=1 // pred_check
      _
    $region7: #{tpu_custom_call.1} parent=1 // pred_check_branch
      %26 = sbr.rel (0) target = $region9
    $region8: #{tpu_custom_call.1} parent=1 // pred_region
      _
    $region9: #{tpu_custom_call.1} parent=1 // pred_fallthru
      _
    // Predicated region
    $region10: #{tpu_custom_call.1} parent=1 // pred_check
      _
    $region11: #{tpu_custom_call.1} parent=1 // pred_check_branch
      %28 = sbr.rel (0) target = $region13
    $region12: #{tpu_custom_call.1} parent=1 // pred_region
      _
    $region13: #{tpu_custom_call.1} parent=1 // pred_fallthru
      _
    // Predicated region
    $region14: #{tpu_custom_call.1} parent=1 // pred_check
      _
    $region15: #{tpu_custom_call.1} parent=1 // pred_check_branch
      %30 = sbr.rel (0) target = $region17
    $region16: #{tpu_custom_call.1} parent=1 // pred_region
      _
    $region17: #{tpu_custom_call.1} parent=1 // pred_fallthru
      _
    // Predicated region
    $region18: #{tpu_custom_call.1} parent=1 // pred_check
      _
    $region19: #{tpu_custom_call.1} parent=1 // pred_check_branch
      %32 = sbr.rel (0) target = $region21
    $region20: #{tpu_custom_call.1} parent=1 // pred_region
      _
    $region21: #{tpu_custom_call.1} parent=1 // pred_fallthru
      _
    // Predicated region
    $region22: #{tpu_custom_call.1} parent=1 // pred_check
      _
    $region23: #{tpu_custom_call.1} parent=1 // pred_check_branch
      %34 = sbr.rel (0) target = $region25
    $region24: #{tpu_custom_call.1} parent=1 // pred_region
      %35 = dma.done [#allocation4], 16
    $region25: #{tpu_custom_call.1} parent=1 // pred_fallthru
      _
    %36 = sfence
    %s37 = sld [smem:[#allocation2]]
    %s38 = sld [smem:[#allocation2 + $0x1]]
    %v39 = vld [vmem:[%s1] sm:$0x3]
    %v40 = vld [vmem:[%s2] sm:$0xff]
    %v41 = vld [vmem:[%s2 + $0x8] sm:$0xff]
    %v42 = vld [vmem:[%s2 + $0x10] sm:$0xff]
    %v43 = vld [vmem:[%s2 + $0x18] sm:$0xff]
    %v44 = vld [vmem:[%s2 + $0x20] sm:$0xff]
    %v45 = vld [vmem:[%s2 + $0x28] sm:$0xff]
    %v46 = vld [vmem:[%s2 + $0x30] sm:$0xff]
    %v47 = vld [vmem:[%s2 + $0x38] sm:$0xff]
    %v48 = vld [vmem:[%s2 + $0x40] sm:$0xff]
    %v49 = vld [vmem:[%s2 + $0x48] sm:$0xff]
    %v50 = vld [vmem:[%s2 + $0x50] sm:$0xff]
    %v51 = vld [vmem:[%s2 + $0x58] sm:$0xff]
    %v52 = vld [vmem:[%s2 + $0x60] sm:$0xff]
    %v53 = vld [vmem:[%s2 + $0x68] sm:$0xff]
    %v54 = vld [vmem:[%s2 + $0x70] sm:$0xff]
    %v55 = vld [vmem:[%s2 + $0x78] sm:$0xff]
    %v56 = vstv %s37
    %57 = vmatprep.subr.mxu0 0.0
    %58 = vmatpush1.msra.mxu0 %v40
    %59 = vmatprep.subr.mxu0 0.0
    %60 = vmatpush1.msra.mxu0 %v41
    %61 = vmatprep.subr.mxu0 0.0
    %62 = vmatpush1.msra.mxu0 %v42
    %63 = vmatprep.subr.mxu0 0.0
    %64 = vmatpush1.msra.mxu0 %v43
    %65 = vmatprep.subr.mxu0 0.0
    %66 = vmatpush1.msra.mxu0 %v44
    %67 = vmatprep.subr.mxu0 0.0
    %68 = vmatpush1.msra.mxu0 %v45
    %69 = vmatprep.subr.mxu0 0.0
    %70 = vmatpush1.msra.mxu0 %v46
    %71 = vmatprep.subr.mxu0 0.0
    %72 = vmatpush1.msra.mxu0 %v47
    %73 = vmatprep.subr.mxu0 0.0
    %74 = vmatpush1.msra.mxu0 %v48
    %75 = vmatprep.subr.mxu0 0.0
    %76 = vmatpush1.msra.mxu0 %v49
    %77 = vmatprep.subr.mxu0 0.0
    %78 = vmatpush1.msra.mxu0 %v50
    %79 = vmatprep.subr.mxu0 0.0
    %80 = vmatpush1.msra.mxu0 %v51
    %81 = vmatprep.subr.mxu0 0.0
    %82 = vmatpush1.msra.mxu0 %v52
    %83 = vmatprep.subr.mxu0 0.0
    %84 = vmatpush1.msra.mxu0 %v53
    %85 = vmatprep.subr.mxu0 0.0
    %86 = vmatpush1.msra.mxu0 %v54
    %87 = vmatprep.subr.mxu0 0.0
    %88 = vmatpush1.msra.mxu0 %v55
    %89 = vmatprep.subr.mxu0 0.0
    %90 = vmatpush1.msra.mxu0 0.0
    %91 = vmatprep.subr.mxu0 0.0
    %92 = vmatpush1.msra.mxu0 0.0
    %93 = vmatprep.subr.mxu0 0.0
    %94 = vmatpush1.msra.mxu0 0.0
    %95 = vmatprep.subr.mxu0 0.0
    %96 = vmatpush1.msra.mxu0 0.0
    %97 = vmatprep.subr.mxu0 0.0
    %98 = vmatpush1.msra.mxu0 0.0
    %99 = vmatprep.subr.mxu0 0.0
    %100 = vmatpush1.msra.mxu0 0.0
    %101 = vmatprep.subr.mxu0 0.0
    %102 = vmatpush1.msra.mxu0 0.0
    %103 = vmatprep.subr.mxu0 0.0
    %104 = vmatpush1.msra.mxu0 0.0
    %105 = vmatprep.subr.mxu0 0.0
    %106 = vmatpush1.msra.mxu0 0.0
    %107 = vmatprep.subr.mxu0 0.0
    %108 = vmatpush1.msra.mxu0 0.0
    %109 = vmatprep.subr.mxu0 0.0
    %110 = vmatpush1.msra.mxu0 0.0
    %111 = vmatprep.subr.mxu0 0.0
    %112 = vmatpush1.msra.mxu0 0.0
    %113 = vmatprep.subr.mxu0 0.0
    %114 = vmatpush1.msra.mxu0 0.0
    %115 = vmatprep.subr.mxu0 0.0
    %116 = vmatpush1.msra.mxu0 0.0
    %117 = vmatprep.subr.mxu0 0.0
    %118 = vmatpush1.msra.mxu0 0.0
    %119 = vmatprep.subr.mxu0 0.0
    %120 = vmatpush1.msra.mxu0 0.0
    %121 = vmatprep.mubr.f32.mxu0 0.0
    %122 = vmatmul.mubr.f32.gmra.mrb[0].mxu0 %v39
    %v123 = vpop.f32.mrb[0].mxu0
    %v124 = vadd.f32 %v56, %v123
    %v125 = vpop.f32.mrb[0].mxu0
    %126 = vdwg.mxu0
    %v127 = vtanh.pop %v124
    %v128 = vld [vmem:[%s3] sm:$0x1]
    %v130 = vlaneseq
    %v131 = vshrl.u32 %v130, 7
    %v132 = vsub.s32 0, %v131
    %v133 = vrot.slane %v128, %v132
    %v135 = vmul.f32 %v133, %v127
    %v136 = vadd.f32 %v39, %v135
    %137 = vst [vmem:[#allocation5] sm:$0x3] %v136
    %v138 = vld [vmem:[%s4] sm:$0xff]
    %v139 = vld [vmem:[%s4 + $0x8] sm:$0xff]
    %v140 = vld [vmem:[%s4 + $0x10] sm:$0xff]
    %v141 = vld [vmem:[%s4 + $0x18] sm:$0xff]
    %v142 = vld [vmem:[%s4 + $0x20] sm:$0xff]
    %v143 = vld [vmem:[%s4 + $0x28] sm:$0xff]
    %v144 = vld [vmem:[%s4 + $0x30] sm:$0xff]
    %v145 = vld [vmem:[%s4 + $0x38] sm:$0xff]
    %v146 = vld [vmem:[%s4 + $0x40] sm:$0xff]
    %v147 = vld [vmem:[%s4 + $0x48] sm:$0xff]
    %v148 = vld [vmem:[%s4 + $0x50] sm:$0xff]
    %v149 = vld [vmem:[%s4 + $0x58] sm:$0xff]
    %v150 = vld [vmem:[%s4 + $0x60] sm:$0xff]
    %v151 = vld [vmem:[%s4 + $0x68] sm:$0xff]
    %v152 = vld [vmem:[%s4 + $0x70] sm:$0xff]
    %v153 = vld [vmem:[%s4 + $0x78] sm:$0xff]
    %154 = vmatprep.subr.mxu0 0.0
    %155 = vmatpush1.msra.mxu0 %v138
    %156 = vmatprep.subr.mxu0 0.0
    %157 = vmatpush1.msra.mxu0 %v139
    %158 = vmatprep.subr.mxu0 0.0
    %159 = vmatpush1.msra.mxu0 %v140
    %160 = vmatprep.subr.mxu0 0.0
    %161 = vmatpush1.msra.mxu0 %v141
    %162 = vmatprep.subr.mxu0 0.0
    %163 = vmatpush1.msra.mxu0 %v142
    %164 = vmatprep.subr.mxu0 0.0
    %165 = vmatpush1.msra.mxu0 %v143
    %166 = vmatprep.subr.mxu0 0.0
    %167 = vmatpush1.msra.mxu0 %v144
    %168 = vmatprep.subr.mxu0 0.0
    %169 = vmatpush1.msra.mxu0 %v145
    %170 = vmatprep.subr.mxu0 0.0
    %171 = vmatpush1.msra.mxu0 %v146
    %172 = vmatprep.subr.mxu0 0.0
    %173 = vmatpush1.msra.mxu0 %v147
    %174 = vmatprep.subr.mxu0 0.0
    %175 = vmatpush1.msra.mxu0 %v148
    %176 = vmatprep.subr.mxu0 0.0
    %177 = vmatpush1.msra.mxu0 %v149
    %178 = vmatprep.subr.mxu0 0.0
    %179 = vmatpush1.msra.mxu0 %v150
    %180 = vmatprep.subr.mxu0 0.0
    %181 = vmatpush1.msra.mxu0 %v151
    %182 = vmatprep.subr.mxu0 0.0
    %183 = vmatpush1.msra.mxu0 %v152
    %184 = vmatprep.subr.mxu0 0.0
    %185 = vmatpush1.msra.mxu0 %v153
    %186 = vmatprep.subr.mxu0 0.0
    %187 = vmatpush1.msra.mxu0 0.0
    %188 = vmatprep.subr.mxu0 0.0
    %189 = vmatpush1.msra.mxu0 0.0
    %190 = vmatprep.subr.mxu0 0.0
    %191 = vmatpush1.msra.mxu0 0.0
    %192 = vmatprep.subr.mxu0 0.0
    %193 = vmatpush1.msra.mxu0 0.0
    %194 = vmatprep.subr.mxu0 0.0
    %195 = vmatpush1.msra.mxu0 0.0
    %196 = vmatprep.subr.mxu0 0.0
    %197 = vmatpush1.msra.mxu0 0.0
    %198 = vmatprep.subr.mxu0 0.0
    %199 = vmatpush1.msra.mxu0 0.0
    %200 = vmatprep.subr.mxu0 0.0
    %201 = vmatpush1.msra.mxu0 0.0
    %202 = vmatprep.subr.mxu0 0.0
    %203 = vmatpush1.msra.mxu0 0.0
    %204 = vmatprep.subr.mxu0 0.0
    %205 = vmatpush1.msra.mxu0 0.0
    %206 = vmatprep.subr.mxu0 0.0
    %207 = vmatpush1.msra.mxu0 0.0
    %208 = vmatprep.subr.mxu0 0.0
    %209 = vmatpush1.msra.mxu0 0.0
    %210 = vmatprep.subr.mxu0 0.0
    %211 = vmatpush1.msra.mxu0 0.0
    %212 = vmatprep.subr.mxu0 0.0
    %213 = vmatpush1.msra.mxu0 0.0
    %214 = vmatprep.subr.mxu0 0.0
    %215 = vmatpush1.msra.mxu0 0.0
    %216 = vmatprep.subr.mxu0 0.0
    %217 = vmatpush1.msra.mxu0 0.0
    %218 = vmatprep.mubr.f32.mxu0 0.0
    %219 = vmatmul.mubr.f32.gmra.mrb[0].mxu0 %v127
    %v220 = vpop.f32.mrb[0].mxu0
    %v221 = vadd.f32 0.0, %v220
    %v222 = vpop.f32.mrb[0].mxu0
    %223 = vdwg.mxu0
    %v224 = vmul.f32 %v221, %v221
    %v225 = vsub.f32 1.0, %v224
    %v226 = vstv %s38
    %v227 = vmul.f32 %v225, %v226
    %v228 = vadd.f32 %v227, 1.0
    %v229 = vand.u32 2147483647, %v228
    %v230 = vadd.f32 %v229, 1e-18
    %v231 = vlog2.pop %v230
    %v232 = vmul.f32 %v231, 0.6931472
    %vm233 = vcmask 25600
    %234 = vst.msk [vmem:[#allocation6] sm:$0x3] %vm233, %v232
    // Predicated region
    $region26: #{tpu_custom_call.1} parent=1 // pred_check
      _
    $region27: #{tpu_custom_call.1} parent=1 // pred_check_branch
      %236 = sbr.rel (0) target = $region29
    $region28: #{tpu_custom_call.1} parent=1 // pred_region
      %s238 = ssub.s32 32, 32
      %239 = vsyncadd [#allocation3], %s238
      %s241 = sshll.u32 [#allocation5], 4
      %s242 = int_to_ptr.vmem [resolvable:$true] %s241
      %244 = dma.vmem_to_hbm [thread:$0]  %s242, 32, %s5, [#allocation3]
    $region29: #{tpu_custom_call.1} parent=1 // pred_fallthru
      _
    // Predicated region
    $region30: #{tpu_custom_call.1} parent=1 // pred_check
      _
    $region31: #{tpu_custom_call.1} parent=1 // pred_check_branch
      %246 = sbr.rel (0) target = $region33
    $region32: #{tpu_custom_call.1} parent=1 // pred_region
      %s248 = ssub.s32 32, 32
      %249 = vsyncadd [#allocation7], %s248
      %s251 = sshll.u32 [#allocation6], 4
      %s252 = int_to_ptr.vmem [resolvable:$true] %s251
      %254 = dma.vmem_to_hbm [thread:$0]  %s252, 32, %s6, [#allocation7]
    $region33: #{tpu_custom_call.1} parent=1 // pred_fallthru
      _
    // Predicated region
    $region34: #{tpu_custom_call.1} parent=1 // pred_check
      _
    $region35: #{tpu_custom_call.1} parent=1 // pred_check_branch
      %256 = sbr.rel (0) target = $region37
    $region36: #{tpu_custom_call.1} parent=1 // pred_region
      %257 = dma.done [#allocation3], 32
    $region37: #{tpu_custom_call.1} parent=1 // pred_fallthru
      _
    // Predicated region
    $region38: #{tpu_custom_call.1} parent=1 // pred_check
      _
    $region39: #{tpu_custom_call.1} parent=1 // pred_check_branch
      %259 = sbr.rel (0) target = $region41
    $region40: #{tpu_custom_call.1} parent=1 // pred_region
      %260 = dma.done [#allocation7], 32
    $region41: #{tpu_custom_call.1} parent=1 // pred_fallthru
      _
    %261 = vsyncpa [#allocation3], 1
    %262 = vsyncpa [#allocation7], 1
    %263 = vsyncpa [#allocation4], 1

</llo_original>
